<compile_context>
chip_gen: v7x
topology: tpu7x:2x2x1
jax: 0.10.0
libtpu: 0.0.40
codegen_flags: <defaults>
</compile_context>

<pallas_src>
import functools

import jax
import jax.numpy as jnp
from jax import lax
from jax.experimental import pallas as pl
from jax.experimental.pallas import tpu as pltpu


# ---------------------------------------------------------------------------
# Kernels
# ---------------------------------------------------------------------------

def _ln2d_kernel_batch(x_ref, w_ref, b_ref, o_ref, *, eps):
    """Batch-blocked variant.  x_ref: (Bt, C, HW); w_ref/b_ref: (1, C, 1)."""
    x = x_ref[...].astype(jnp.float32)
    u = jnp.mean(x, axis=1, keepdims=True)          # mean over channels
    d = x - u
    s = jnp.mean(d * d, axis=1, keepdims=True)      # biased variance
    y = d * lax.rsqrt(s + eps)                      # rsqrt -> EUP (free slot)
    w = w_ref[...].astype(jnp.float32)
    b = b_ref[...].astype(jnp.float32)
    o_ref[...] = (w * y + b).astype(o_ref.dtype)


def _ln2d_kernel_spatial(x_ref, w_ref, b_ref, o_ref, *, eps):
    """Spatial-tiled variant.  x_ref: (C, tile_hw); w_ref/b_ref: (C, 1)."""
    x = x_ref[...].astype(jnp.float32)
    u = jnp.mean(x, axis=0, keepdims=True)
    d = x - u
    s = jnp.mean(d * d, axis=0, keepdims=True)
    y = d * lax.rsqrt(s + eps)
    w = w_ref[...].astype(jnp.float32)
    b = b_ref[...].astype(jnp.float32)
    o_ref[...] = (w * y + b).astype(o_ref.dtype)


# ---------------------------------------------------------------------------
# Wrapper
# ---------------------------------------------------------------------------

def _vmem_capacity_bytes():
    """Best-effort per-core VMEM capacity; conservative fallback (v7x floor)."""
    try:
        info = pltpu.get_tpu_info()
        cap = int(getattr(info, "vmem_capacity_bytes", 0) or 0)
        if cap > 0:
            return cap
    except Exception:
        pass
    return 64 * 1024 * 1024


def _round_down_128(n):
    return (n // 128) * 128


def ln2d(x, weight, bias, eps=1e-6):
    """Channel-wise LayerNorm matching PyTorch LN2d.forward.

    x: (B, C, H, W);  weight/bias: (C,)  ->  (B, C, H, W)
    """
    B, C, H, W = x.shape
    HW = H * W
    itemsize = jnp.dtype(x.dtype).itemsize

    x3 = x.reshape(B, C, HW)  # free reshape (merges contiguous trailing dims)

    # ---- VMEM budgeting ---------------------------------------------------
    # Per block we pay: 2x double-buffered input + 2x double-buffered output
    # (in the input dtype) plus ~3 tile-sized f32 temporaries inside the
    # kernel (f32 copy of x, d = x - u, fused affine result).
    vmem_cap = _vmem_capacity_bytes()
    budget = int(0.70 * vmem_cap)                    # block-sizing budget
    vmem_limit = max(32 * 1024 * 1024, int(0.85 * vmem_cap))
    overhead = 4 + (12 + itemsize - 1) // itemsize   # f32: 7, bf16: 10, i8: 16
    max_block_bytes = max(64 * 1024, budget // overhead)
    target_block_bytes = min(4 * 1024 * 1024, max_block_bytes)

    slab_bytes = C * HW * itemsize                   # one batch element

    if B >= 2 and slab_bytes <= target_block_bytes:
        # ---- Strategy A: block over the batch dimension --------------------
        bt = max(1, min(B, target_block_bytes // max(1, slab_bytes)))
        # Keep >= min(B, 4) grid steps so v7x megacore has work for both TCs.
        min_steps = min(B, 4)
        bt = min(bt, max(1, B // min_steps))
        num_b = pl.cdiv(B, bt)

        w3 = weight.reshape(1, C, 1)
        b3 = bias.reshape(1, C, 1)

        out = pl.pallas_call(
            functools.partial(_ln2d_kernel_batch, eps=eps),
            out_shape=jax.ShapeDtypeStruct((B, C, HW), x.dtype),
            grid_spec=pltpu.PrefetchScalarGridSpec(
                num_scalar_prefetch=0,
                grid=(num_b,),
                in_specs=[
                    pl.BlockSpec((bt, C, HW), lambda i: (i, 0, 0)),
                    # weight / bias stay VMEM-resident across all grid steps.
                    pl.BlockSpec((1, C, 1), lambda i: (0, 0, 0)),
                    pl.BlockSpec((1, C, 1), lambda i: (0, 0, 0)),
                ],
                out_specs=pl.BlockSpec((bt, C, HW), lambda i: (i, 0, 0)),
            ),
            compiler_params=pltpu.CompilerParams(
                dimension_semantics=("parallel",),
                vmem_limit_bytes=vmem_limit,
            ),
        )(x3, w3, b3)
    else:
        # ---- Strategy B: tile the spatial axis ------------------------------
        # dtype-aware minimum lane width so each strided-DMA row is >= 2 KiB,
        # but never let it blow past the VMEM-derived block cap.
        min_lanes = max(128, 2048 // itemsize)
        budget_tile = max(128, _round_down_128(max_block_bytes // (C * itemsize)))
        want_tile = max(128, min_lanes,
                        _round_down_128(target_block_bytes // (C * itemsize)))
        tile_hw = min(want_tile, budget_tile)

        if tile_hw >= HW:
            tile_hw, num_hw = HW, 1
        else:
            num_hw = pl.cdiv(HW, tile_hw)

        # Megacore: never leave the grid at a single step if we can split.
        if B * num_hw < 2 and HW > 128:
            split = min(HW, ((pl.cdiv(HW, 2) + 127) // 128) * 128)
            if split < HW:
                tile_hw = split
                num_hw = pl.cdiv(HW, tile_hw)

        w2 = weight.reshape(C, 1)
        b2 = bias.reshape(C, 1)

        out = pl.pallas_call(
            functools.partial(_ln2d_kernel_spatial, eps=eps),
            out_shape=jax.ShapeDtypeStruct((B, C, HW), x.dtype),
            grid_spec=pltpu.PrefetchScalarGridSpec(
                num_scalar_prefetch=0,
                grid=(B, num_hw),
                in_specs=[
                    # Batch dim squeezed out; kernel sees (C, tile_hw).
                    pl.BlockSpec((None, C, tile_hw), lambda b, j: (b, 0, j)),
                    pl.BlockSpec((C, 1), lambda b, j: (0, 0)),
                    pl.BlockSpec((C, 1), lambda b, j: (0, 0)),
                ],
                out_specs=pl.BlockSpec((None, C, tile_hw), lambda b, j: (b, 0, j)),
            ),
            compiler_params=pltpu.CompilerParams(
                dimension_semantics=("parallel", "parallel"),
                vmem_limit_bytes=vmem_limit,
            ),
        )(x3, w2, b2)

    return out.reshape(B, C, H, W)


def ln2d_reference(x, weight, bias, eps=1e-6):
    """Pure-JAX reference matching the PyTorch forward exactly."""
    u = jnp.mean(x, axis=1, keepdims=True)
    s = jnp.mean((x - u) ** 2, axis=1, keepdims=True)
    xn = (x - u) / jnp.sqrt(s + eps)
    return weight[None, :, None, None] * xn + bias[None, :, None, None]


if __name__ == "__main__":
    key = jax.random.PRNGKey(0)
    B, C, H, W = 2, 4, 16, 16
    kx, kw, kb = jax.random.split(key, 3)

    x = jax.random.normal(kx, (B, C, H, W), dtype=jnp.float32)
    # Module __init__ uses ones/zeros; perturb slightly so the affine path is
    # actually exercised.
    weight = jnp.ones((C,), jnp.float32) + 0.1 * jax.random.normal(kw, (C,))
    bias = jnp.zeros((C,), jnp.float32) + 0.1 * jax.random.normal(kb, (C,))

    out = ln2d(x, weight, bias)
    out = jax.block_until_ready(out)

    ref = ln2d_reference(x, weight, bias)
    assert out.shape == (B, C, H, W)
    assert jnp.allclose(out, ref, atol=1e-5, rtol=1e-5)

    print("KERNEL_OK")
</pallas_src>

<mosaic_0001>
module attributes {stable_mosaic.version = 11 : i64} {
  func.func @_ln2d_kernel_batch(%arg0: i32, %arg1: memref<1x4x256xf32, #tpu.memory_space<vmem>>, %arg2: memref<1x4x1xf32, #tpu.memory_space<vmem>>, %arg3: memref<1x4x1xf32, #tpu.memory_space<vmem>>, %arg4: memref<1x4x256xf32, #tpu.memory_space<vmem>>) attributes {dimension_semantics = [#tpu.dimension_semantics<parallel>], iteration_bounds = array<i64: 2>, scalar_prefetch = 0 : i64, scratch_operands = 0 : i64, tpu.core_type = #tpu.core_type<tc>, window_params = [{transform_indices = @transform_0, window_bounds = array<i64: 1, 4, 256>}, {pipeline_mode = #tpu.pipeline_mode<synchronous>, transform_indices = @transform_1, window_bounds = array<i64: 1, 4, 1>}, {pipeline_mode = #tpu.pipeline_mode<synchronous>, transform_indices = @transform_2, window_bounds = array<i64: 1, 4, 1>}, {transform_indices = @transform_3, window_bounds = array<i64: 1, 4, 256>}]} {
    %c0 = arith.constant 0 : index
    %c0_0 = arith.constant 0 : index
    %c0_1 = arith.constant 0 : index
    %0 = vector.load %arg1[%c0, %c0_0, %c0_1] : memref<1x4x256xf32, #tpu.memory_space<vmem>>, vector<1x4x256xf32>
    %cst = arith.constant dense<0.000000e+00> : vector<1x256xf32>
    %1 = vector.multi_reduction <add>, %0, %cst [1] : vector<1x4x256xf32> to vector<1x256xf32>
    %2 = vector.shape_cast %1 : vector<1x256xf32> to vector<1x1x256xf32>
    %cst_2 = arith.constant 4.000000e+00 : f32
    %3 = vector.broadcast %cst_2 : f32 to vector<1x1x256xf32>
    %4 = arith.divf %2, %3 : vector<1x1x256xf32>
    %5 = vector.broadcast %4 : vector<1x1x256xf32> to vector<1x4x256xf32>
    %6 = arith.subf %0, %5 : vector<1x4x256xf32>
    %7 = arith.mulf %6, %6 : vector<1x4x256xf32>
    %cst_3 = arith.constant dense<0.000000e+00> : vector<1x256xf32>
    %8 = vector.multi_reduction <add>, %7, %cst_3 [1] : vector<1x4x256xf32> to vector<1x256xf32>
    %9 = vector.shape_cast %8 : vector<1x256xf32> to vector<1x1x256xf32>
    %cst_4 = arith.constant 4.000000e+00 : f32
    %10 = vector.broadcast %cst_4 : f32 to vector<1x1x256xf32>
    %11 = arith.divf %9, %10 : vector<1x1x256xf32>
    %cst_5 = arith.constant 9.99999997E-7 : f32
    %12 = vector.broadcast %cst_5 : f32 to vector<1x1x256xf32>
    %13 = arith.addf %11, %12 : vector<1x1x256xf32>
    %14 = math.rsqrt %13 : vector<1x1x256xf32>
    %15 = vector.broadcast %14 : vector<1x1x256xf32> to vector<1x4x256xf32>
    %16 = arith.mulf %6, %15 : vector<1x4x256xf32>
    %c0_6 = arith.constant 0 : index
    %c0_7 = arith.constant 0 : index
    %c0_8 = arith.constant 0 : index
    %17 = vector.load %arg2[%c0_6, %c0_7, %c0_8] : memref<1x4x1xf32, #tpu.memory_space<vmem>>, vector<1x4x1xf32>
    %c0_9 = arith.constant 0 : index
    %c0_10 = arith.constant 0 : index
    %c0_11 = arith.constant 0 : index
    %18 = vector.load %arg3[%c0_9, %c0_10, %c0_11] : memref<1x4x1xf32, #tpu.memory_space<vmem>>, vector<1x4x1xf32>
    %19 = vector.broadcast %17 : vector<1x4x1xf32> to vector<1x4x256xf32>
    %20 = arith.mulf %19, %16 : vector<1x4x256xf32>
    %21 = vector.broadcast %18 : vector<1x4x1xf32> to vector<1x4x256xf32>
    %22 = arith.addf %20, %21 : vector<1x4x256xf32>
    %c0_12 = arith.constant 0 : index
    %c0_13 = arith.constant 0 : index
    %c0_14 = arith.constant 0 : index
    %23 = vector.load %arg4[%c0_12, %c0_13, %c0_14] : memref<1x4x256xf32, #tpu.memory_space<vmem>>, vector<1x4x256xf32>
    tpu.vector_store %arg4[%c0_12, %c0_13, %c0_14], %22 {strides = array<i32>} : memref<1x4x256xf32, #tpu.memory_space<vmem>>, vector<1x4x256xf32>,
    return
  }
  func.func @transform_0(%arg0: i32) -> (i32, i32, i32) {
    %c0_i32 = arith.constant 0 : i32
    %c0_i32_0 = arith.constant 0 : i32
    %c0_i32_1 = arith.constant 0 : i32
    return %arg0, %c0_i32, %c0_i32_0 : i32, i32, i32
  }
  func.func @transform_1(%arg0: i32) -> (i32, i32, i32) {
    %c0_i32 = arith.constant 0 : i32
    %c0_i32_0 = arith.constant 0 : i32
    %c0_i32_1 = arith.constant 0 : i32
    %c0_i32_2 = arith.constant 0 : i32
    return %c0_i32, %c0_i32_0, %c0_i32_1 : i32, i32, i32
  }
  func.func @transform_2(%arg0: i32) -> (i32, i32, i32) {
    %c0_i32 = arith.constant 0 : i32
    %c0_i32_0 = arith.constant 0 : i32
    %c0_i32_1 = arith.constant 0 : i32
    %c0_i32_2 = arith.constant 0 : i32
    return %c0_i32, %c0_i32_0, %c0_i32_1 : i32, i32, i32
  }
  func.func @transform_3(%arg0: i32) -> (i32, i32, i32) {
    %c0_i32 = arith.constant 0 : i32
    %c0_i32_0 = arith.constant 0 : i32
    %c0_i32_1 = arith.constant 0 : i32
    return %arg0, %c0_i32, %c0_i32_0 : i32, i32, i32
  }
}

</mosaic_0001>

<llo_original>
// kernel: tpu_custom_call.1
$region0: #{tpu_custom_call.1}
  #allocation0 [shape = 'u32[]', space=smem, size = 0x4, offset = 0x4, fixed_abs, tag = 'smem constant byte address 0x4 - core index']
  #allocation1 [shape = 'u32[144,128]{1,0:T(1,128)}', space=vmem, size = 0x12000, scoped, tag = 'internal scratch']
  %s0 = inlined_call_operand.hbm [shape: f32[2,4,256], index: 0, kind: input, shape index: {}]
  %s1 = inlined_call_operand.vmem [shape: f32[1,4,1], index: 1, kind: input, shape index: {}]
  %s2 = inlined_call_operand.vmem [shape: f32[1,4,1], index: 2, kind: input, shape index: {}]
  %s3 = inlined_call_operand.hbm [shape: f32[2,4,256], index: 3, kind: output, shape index: {}]
  %s4 = sld [smem:[#allocation0]]
  $region49: #{tpu_custom_call.1} parent=0
    _
  %s6 = ssub.s32 1, %s4
  %s7 = scalar_select 0, %s6, %s4
  $region1: #{tpu_custom_call.1} parent=0
    #allocation2 [shape = 'u8[8192]{0}', space=vmem, size = 0x2000, scoped, tag = 'input window, operand 0']
    #allocation3 [shape = 's32[2]{0}', space=sflag, size = 0x8, scoped, tag = 'scoped memory for tpu_custom_call.1']
    #allocation4 [shape = 's32[2]{0}', space=sflag, size = 0x8, scoped, tag = 'scoped memory for tpu_custom_call.1']
    #allocation5 [shape = 'u8[8192]{0}', space=vmem, size = 0x2000, scoped, tag = 'output window, operand 0']
    %8 = vsyncpa [#allocation3], 0
    %s9 = scalar_lea.sflag [#allocation3], 1
    %10 = vsyncpa %s9, 0
    %11 = vsyncpa [#allocation4], 0
    %s12 = scalar_lea.sflag [#allocation4], 1
    %13 = vsyncpa %s12, 0
    loop: start=0, step=1, limit=4
    $region2: #{tpu_custom_call.1} parent=1 // loop_pre_header
      _
    $region3: #{tpu_custom_call.1} parent=1 // loop_header
      %s15 = sphi 0, %s19
      %p16 = scmp.ge.s32.totalorder %s15, 4
      %s25 = sphi 0, %s27
      %s28 = sphi 0, %s25
      %s29 = sphi 0, %s28
      %s45 = sphi 0, %s29
      %s49 = sphi 0, %s49
      %s51 = sphi 0, %s49
      %s52 = sphi 0, %s51
      %s66 = sphi 0, %s52
      %s70 = sphi 0, %s70
      %s72 = sphi 0, %s70
      %s73 = sphi 0, %s72
      %s87 = sphi 0, %s73
      %s93 = sphi 0, %s95
      %s96 = sphi 0, %s93
      %s97 = sphi 0, %s96
      %s113 = sphi 0, %s97
    $region4: #{tpu_custom_call.1} parent=1 // loop_header_branch
      %18 = sbr.rel (%p16) target = $region8
    $region5: #{tpu_custom_call.1} parent=1 // loop_body
      %s20 = ssub.s32 %s15, 1
      %s21 = ssub.s32 %s15, 2
      %s22 = sadd.s32 %s15, 1
      %s23 = ssub.s32 %s15, %s22
      %p24 = scmp.eq.s32.totalorder %s23, 0
      %s26 = sadd.s32 %s25, 1
      %s27 = scalar_select %p24, %s25, %s26
      %p30 = pneg %p24
      %p31 = scmp.eq.s32.totalorder %s15, 1
      %p32 = por %p30, %p31
      %p33 = scmp.ne.s32.totalorder %s25, %s28
      %p34 = scmp.eq.s32.totalorder %s15, 0
      %p35 = por %p33, %p34
      %p36 = scmp.ne.s32.totalorder %s25, %s28
      %p37 = scmp.eq.s32.totalorder %s20, 1
      %p38 = por %p36, %p37
      %p39 = scmp.ne.s32.totalorder %s28, %s29
      %p40 = scmp.eq.s32.totalorder %s20, 0
      %p41 = por %p39, %p40
      %p42 = scmp.ne.s32.totalorder %s28, %s29
      %p43 = scmp.eq.s32.totalorder %s21, 1
      %p44 = por %p42, %p43
      %p46 = scmp.ne.s32.totalorder %s29, %s45
      %p47 = scmp.eq.s32.totalorder %s21, 0
      %p48 = por %p46, %p47
      %s50 = sadd.s32 %s49, 1
      %p53 = scmp.eq.s32.totalorder %s15, 1
      %p54 = scmp.ne.s32.totalorder %s49, %s51
      %p55 = scmp.eq.s32.totalorder %s15, 0
      %p56 = por %p54, %p55
      %p57 = scmp.ne.s32.totalorder %s49, %s51
      %p58 = scmp.eq.s32.totalorder %s20, 1
      %p59 = por %p57, %p58
      %p60 = scmp.ne.s32.totalorder %s51, %s52
      %p61 = scmp.eq.s32.totalorder %s20, 0
      %p62 = por %p60, %p61
      %p63 = scmp.ne.s32.totalorder %s51, %s52
      %p64 = scmp.eq.s32.totalorder %s21, 1
      %p65 = por %p63, %p64
      %p67 = scmp.ne.s32.totalorder %s52, %s66
      %p68 = scmp.eq.s32.totalorder %s21, 0
      %p69 = por %p67, %p68
      %s71 = sadd.s32 %s70, 1
      %p74 = scmp.eq.s32.totalorder %s15, 1
      %p75 = scmp.ne.s32.totalorder %s70, %s72
      %p76 = scmp.eq.s32.totalorder %s15, 0
      %p77 = por %p75, %p76
      %p78 = scmp.ne.s32.totalorder %s70, %s72
      %p79 = scmp.eq.s32.totalorder %s20, 1
      %p80 = por %p78, %p79
      %p81 = scmp.ne.s32.totalorder %s72, %s73
      %p82 = scmp.eq.s32.totalorder %s20, 0
      %p83 = por %p81, %p82
      %p84 = scmp.ne.s32.totalorder %s72, %s73
      %p85 = scmp.eq.s32.totalorder %s21, 1
      %p86 = por %p84, %p85
      %p88 = scmp.ne.s32.totalorder %s73, %s87
      %p89 = scmp.eq.s32.totalorder %s21, 0
      %p90 = por %p88, %p89
      %s91 = ssub.s32 %s15, %s22
      %p92 = scmp.eq.s32.totalorder %s91, 0
      %s94 = sadd.s32 %s93, 1
      %s95 = scalar_select %p92, %s93, %s94
      %p98 = pneg %p92
      %p99 = scmp.eq.s32.totalorder %s15, 1
      %p100 = por %p98, %p99
      %p101 = scmp.ne.s32.totalorder %s93, %s96
      %p102 = scmp.eq.s32.totalorder %s15, 0
      %p103 = por %p101, %p102
      %p104 = scmp.ne.s32.totalorder %s93, %s96
      %p105 = scmp.eq.s32.totalorder %s20, 1
      %p106 = por %p104, %p105
      %p107 = scmp.ne.s32.totalorder %s96, %s97
      %p108 = scmp.eq.s32.totalorder %s20, 0
      %p109 = por %p107, %p108
      %p110 = scmp.ne.s32.totalorder %s96, %s97
      %p111 = scmp.eq.s32.totalorder %s21, 1
      %p112 = por %p110, %p111
      %p114 = scmp.ne.s32.totalorder %s97, %s113
      %p115 = scmp.eq.s32.totalorder %s21, 0
      %p116 = por %p114, %p115
      %p117 = scmp.le.s32.totalorder 1, %s15
      %p118 = scmp.lt.s32.totalorder %s15, 3
      %p119 = pnand %p117, %p118
      %p120 = pneg %p119
      // Predicated region
      $region9: #{tpu_custom_call.1} parent=5 // pred_check
        _
      $region10: #{tpu_custom_call.1} parent=5 // pred_check_branch
        %122 = sbr.rel (%p119) target = $region12
      $region11: #{tpu_custom_call.1} parent=5 // pred_region
        %s123 = ssub.s32 %s15, 1
        // Predicated region
        $region13: #{tpu_custom_call.1} parent=11 // pred_check
          %p124 = pneg %p62
        $region14: #{tpu_custom_call.1} parent=11 // pred_check_branch
          %126 = sbr.rel (%p124) target = $region16
        $region15: #{tpu_custom_call.1} parent=11 // pred_region
          _
        $region16: #{tpu_custom_call.1} parent=11 // pred_fallthru
          _
        // Predicated region
        $region17: #{tpu_custom_call.1} parent=11 // pred_check
          %p127 = pneg %p83
        $region18: #{tpu_custom_call.1} parent=11 // pred_check_branch
          %129 = sbr.rel (%p127) target = $region20
        $region19: #{tpu_custom_call.1} parent=11 // pred_region
          _
        $region20: #{tpu_custom_call.1} parent=11 // pred_fallthru
          _
      $region12: #{tpu_custom_call.1} parent=5 // pred_fallthru
        _
      %p130 = scmp.lt.s32.totalorder %s15, 2
      // Predicated region
      $region21: #{tpu_custom_call.1} parent=5 // pred_check
        %p131 = pneg %p130
      $region22: #{tpu_custom_call.1} parent=5 // pred_check_branch
        %133 = sbr.rel (%p131) target = $region24
      $region23: #{tpu_custom_call.1} parent=5 // pred_region
        // Predicated region
        $region25: #{tpu_custom_call.1} parent=23 // pred_check
          %p134 = pneg %p35
        $region26: #{tpu_custom_call.1} parent=23 // pred_check_branch
          %136 = sbr.rel (%p134) target = $region28
        $region27: #{tpu_custom_call.1} parent=23 // pred_region
          %s137 = sand.u32 %s25, 1
          %s138 = scalar_lea.sflag [#allocation3], %s137
          %s139 = sand.u32 %s25, 1
          %s140 = smul.addr %s139, 8
          %s141 = scalar_lea.vmem [#allocation2], %s140
          %s143 = ssub.s32 128, 128
          %144 = vsyncadd %s138, %s143
          %s145 = smul.addr %s15, 2
          %s146 = smul.addr %s145, 64
          %s147 = scalar_lea.hbm %s0, %s146
          %s149 = sshll.u32 %s141, 4
          %s150 = int_to_ptr.vmem [resolvable:$true] %s149
          %152 = dma.hbm_to_vmem [thread:$0]  %s147, 128, %s150, %s138
        $region28: #{tpu_custom_call.1} parent=23 // pred_fallthru
          _
      $region24: #{tpu_custom_call.1} parent=5 // pred_fallthru
        _
      %p153 = scmp.le.s32.totalorder 1, %s15
      %p154 = scmp.lt.s32.totalorder %s15, 3
      %p155 = pnand %p153, %p154
      %p156 = pneg %p155
      // Predicated region
      $region29: #{tpu_custom_call.1} parent=5 // pred_check
        _
      $region30: #{tpu_custom_call.1} parent=5 // pred_check_branch
        %158 = sbr.rel (%p155) target = $region32
      $region31: #{tpu_custom_call.1} parent=5 // pred_region
        %s159 = ssub.s32 %s15, 1
        %s160 = sand.u32 %s28, 1
        %s161 = scalar_lea.sflag [#allocation3], %s160
        %s162 = sand.u32 %s28, 1
        %s163 = smul.addr %s162, 8
        %s164 = scalar_lea.vmem [#allocation2], %s163
        // Predicated region
        $region33: #{tpu_custom_call.1} parent=31 // pred_check
          %p165 = pneg %p41
        $region34: #{tpu_custom_call.1} parent=31 // pred_check_branch
          %167 = sbr.rel (%p165) target = $region36
        $region35: #{tpu_custom_call.1} parent=31 // pred_region
          %168 = dma.done %s161, 128
        $region36: #{tpu_custom_call.1} parent=31 // pred_fallthru
          _
        %s169 = sand.u32 %s28, 1
        %s170 = scalar_lea.sflag [#allocation3], %s169
        %s171 = sand.u32 %s28, 1
        %s172 = smul.addr %s171, 8
        %s173 = scalar_lea.vmem [#allocation2], %s172
        %p174 = pneg %p41
        %p175 = pneg %p38
        %p176 = pneg %p62
        %p177 = pneg %p59
        %p178 = pneg %p83
        %p179 = pneg %p80
        %p180 = pneg %p109
        %p181 = pneg %p106
        %s182 = sand.u32 %s96, 1
        %s183 = scalar_lea.sflag [#allocation4], %s182
        %s184 = sand.u32 %s96, 1
        %s185 = smul.addr %s184, 8
        %s186 = scalar_lea.vmem [#allocation5], %s185
        %v187 = vld [vmem:[%s164] sm:$0xff]
        %v189 = vcombine.high %v187, %v187
        %vm191 = vcmask 1043456
        %v192 = vsel %vm191, %v187, 0.0
        %v193 = vrot.slane %v192, 4
        %v194 = vadd.f32 %v192, %v193
        %v195 = vrot.slane %v194, 2
        %v196 = vadd.f32 %v194, %v195
        %v197 = vrot.slane %v196, 1
        %v198 = vadd.f32 %v196, %v197
        %v199 = vsel %vm191, %v189, 0.0
        %v200 = vrot.slane %v199, 4
        %v201 = vadd.f32 %v199, %v200
        %v202 = vrot.slane %v201, 2
        %v203 = vadd.f32 %v201, %v202
        %v204 = vrot.slane %v203, 1
        %v205 = vadd.f32 %v203, %v204
        %v206 = vrcp.pop 4.0
        %v207 = vmul.f32 %v198, %v206
        %v208 = vmul.f32 %v205, %v206
        %v211 = vcombine.low %v207, %v208
        %v213 = vsub.f32 %v187, %v211
        %v214 = vmul.f32 %v213, %v213
        %v216 = vcombine.high %v214, %v214
        %v218 = vsel %vm191, %v214, 0.0
        %v219 = vrot.slane %v218, 4
        %v220 = vadd.f32 %v218, %v219
        %v221 = vrot.slane %v220, 2
        %v222 = vadd.f32 %v220, %v221
        %v223 = vrot.slane %v222, 1
        %v224 = vadd.f32 %v222, %v223
        %v225 = vsel %vm191, %v216, 0.0
        %v226 = vrot.slane %v225, 4
        %v227 = vadd.f32 %v225, %v226
        %v228 = vrot.slane %v227, 2
        %v229 = vadd.f32 %v227, %v228
        %v230 = vrot.slane %v229, 1
        %v231 = vadd.f32 %v229, %v230
        %v232 = vmul.f32 %v224, %v206
        %v233 = vmul.f32 %v231, %v206
        %v234 = vadd.f32 %v232, 1e-06
        %v235 = vadd.f32 %v233, 1e-06
        %v236 = vrsqrt.pop %v234
        %v237 = vrsqrt.pop %v235
        %v240 = vcombine.low %v236, %v237
        %v242 = vmul.f32 %v213, %v240
        %v243 = vld [vmem:[%s1] sm:$0xf]
        %v244 = vld [vmem:[%s2] sm:$0xf]
        %246 = vset.pattern.permute.xlu0 0
        %247 = vperm.xlu0 %246, %v243
        %v248 = vpop.permute.xlu0 %247
        %v251 = vcombine.high %v242, %v242
        %v253 = vmul.f32 %v248, %v242
        %v254 = vmul.f32 %v248, %v251
        %256 = vset.pattern.permute.xlu0 0
        %257 = vperm.xlu0 %256, %v244
        %v258 = vpop.permute.xlu0 %257
        %v260 = vadd.f32 %v253, %v258
        %v261 = vadd.f32 %v254, %v258
        %v264 = vcombine.low %v260, %v261
        %266 = vst [vmem:[%s186] sm:$0xff] %v264
        %s267 = sand.u32 %s96, 1
        %s268 = scalar_lea.sflag [#allocation4], %s267
        %s269 = sand.u32 %s96, 1
        %s270 = smul.addr %s269, 8
        %s271 = scalar_lea.vmem [#allocation5], %s270
        // Predicated region
        $region37: #{tpu_custom_call.1} parent=31 // pred_check
          %p272 = pneg %p106
        $region38: #{tpu_custom_call.1} parent=31 // pred_check_branch
          %274 = sbr.rel (%p272) target = $region40
        $region39: #{tpu_custom_call.1} parent=31 // pred_region
          %s276 = ssub.s32 128, 128
          %277 = vsyncadd %s268, %s276
          %s278 = smul.addr %s20, 2
          %s279 = smul.addr %s278, 64
          %s280 = scalar_lea.hbm %s3, %s279
          %s282 = sshll.u32 %s271, 4
          %s283 = int_to_ptr.vmem [resolvable:$true] %s282
          %285 = dma.vmem_to_hbm [thread:$0]  %s283, 128, %s280, %s268
        $region40: #{tpu_custom_call.1} parent=31 // pred_fallthru
          _
      $region32: #{tpu_custom_call.1} parent=5 // pred_fallthru
        _
      %p286 = scmp.le.s32.totalorder 2, %s15
      // Predicated region
      $region41: #{tpu_custom_call.1} parent=5 // pred_check
        %p287 = pneg %p286
      $region42: #{tpu_custom_call.1} parent=5 // pred_check_branch
        %289 = sbr.rel (%p287) target = $region44
      $region43: #{tpu_custom_call.1} parent=5 // pred_region
        %s290 = ssub.s32 %s15, 2
        // Predicated region
        $region45: #{tpu_custom_call.1} parent=43 // pred_check
          %p291 = pneg %p112
        $region46: #{tpu_custom_call.1} parent=43 // pred_check_branch
          %293 = sbr.rel (%p291) target = $region48
        $region47: #{tpu_custom_call.1} parent=43 // pred_region
          %s294 = sand.u32 %s97, 1
          %s295 = scalar_lea.sflag [#allocation4], %s294
          %s296 = sand.u32 %s97, 1
          %s297 = smul.addr %s296, 8
          %s298 = scalar_lea.vmem [#allocation5], %s297
          %299 = dma.done %s295, 128
        $region48: #{tpu_custom_call.1} parent=43 // pred_fallthru
          _
      $region44: #{tpu_custom_call.1} parent=5 // pred_fallthru
        _
    $region6: #{tpu_custom_call.1} parent=1 // loop_footer
      %s19 = sadd.s32 1, %s15
    $region7: #{tpu_custom_call.1} parent=1 // loop_footer_branch
      %14 = sbr.rel target = $region3
    $region8: #{tpu_custom_call.1} parent=1 // loop_exit
      _
    %300 = vsyncpa [#allocation3], 1
    %s301 = scalar_lea.sflag [#allocation3], 1
    %302 = vsyncpa %s301, 1
    %303 = vsyncpa [#allocation4], 1
    %s304 = scalar_lea.sflag [#allocation4], 1
    %305 = vsyncpa %s304, 1

</llo_original>
